<compile_context>
chip_gen: v7x
topology: tpu7x:2x2x1
jax: 0.10.0
libtpu: 0.0.40
codegen_flags: <defaults>
</compile_context>

<pallas_src>
import functools
import math

import jax
import jax.numpy as jnp
from jax import lax
from jax.experimental import pallas as pl
from jax.experimental.pallas import tpu as pltpu


_MIN_PALLAS_ELEMS = 65536                 # below this, XLA's fused reduce wins
_TARGET_BLOCK_BYTES = 2 * 1024 * 1024     # ~2 MiB streamed block: ~85% HBM roofline


def _num_tensorcores():
    """Best-effort TensorCore count (v7x: 2 per chip; v5e/v6e: 1)."""
    try:
        info = pltpu.get_tpu_info()
    except Exception:
        return 1
    for name in ("num_cores", "core_count", "num_tensorcores", "tensorcore_count"):
        v = getattr(info, name, None)
        if isinstance(v, int) and v >= 1:
            return v
    return 1


def _sse_kernel(out_ref, tgt_ref, psum_ref, acc_ref, *, rows, tile_rows, fold_rows):
    """Accumulate sum((target - output)^2) over this chunk's row tiles."""
    c = pl.program_id(0)                      # chunk / core index ("parallel")
    t = pl.program_id(1)                      # tile index in chunk ("arbitrary")
    tiles_per_chunk = pl.num_programs(1)
    lanes = out_ref.shape[-1]

    @pl.when(t == 0)
    def _():
        acc_ref[...] = jnp.zeros_like(acc_ref)

    logical_tile = c * tiles_per_chunk + t
    # True only for the ragged last tile and clamped overflow tiles.
    needs_mask = (logical_tile + 1) * tile_rows > rows

    def accumulate(d):
        sq = d * d
        if fold_rows:
            # (tile_rows, lanes) -> (tile_rows//8, 8, lanes) keeps the (8,128)
            # tiles intact (layout-preserving); fold with plain VPU adds into
            # the small (8, lanes) accumulator.
            acc_ref[...] += jnp.sum(sq.reshape(tile_rows // 8, 8, lanes), axis=0)
        else:
            acc_ref[...] += sq

    # Fast path: interior tiles -- no per-element masking in the hot loop.
    @pl.when(jnp.logical_not(needs_mask))
    def _():
        d = tgt_ref[...].astype(jnp.float32) - out_ref[...].astype(jnp.float32)
        accumulate(d)

    # Slow path: ragged / overflow tiles. Mask BEFORE the square so NaN/Inf
    # garbage in the out-of-bounds region of the block can never propagate.
    @pl.when(needs_mask)
    def _():
        row_ids = (logical_tile * tile_rows
                   + lax.broadcasted_iota(jnp.int32, (tile_rows, lanes), 0))
        valid = row_ids < rows
        d = tgt_ref[...].astype(jnp.float32) - out_ref[...].astype(jnp.float32)
        d = jnp.where(valid, d, 0.0)
        accumulate(d)

    @pl.when(t == tiles_per_chunk - 1)
    def _():
        # One cross-lane reduction per chunk; splat into the (1, 8, 128) block.
        psum_ref[...] = (jnp.zeros(psum_ref.shape, jnp.float32)
                         + jnp.sum(acc_ref[...]))


def _choose_layout(n, itemsize):
    """Pick a lane-dense (rows, lanes) view, tile_rows, and flat padding."""
    lanes = None
    for cand in (1024, 512, 256, 128):
        if n % cand == 0:
            lanes = cand
            break
    if lanes is None:
        # Element count not divisible by 128: pad the flat view with zeros up
        # to a multiple of 8*128 (<= 1023 elements).  Zeros contribute nothing
        # to the SSE, so no extra masking is needed for the padded region.
        lanes = 128
        n_pad = ((n + 8 * lanes - 1) // (8 * lanes)) * (8 * lanes)
    else:
        n_pad = n
    rows = n_pad // lanes
    # ~2 MiB of the *streamed* dtype per input block (itemsize-aware).
    target_rows = max(8, _TARGET_BLOCK_BYTES // (lanes * itemsize))
    target_rows -= target_rows % 8
    tile_rows = rows if rows <= target_rows else target_rows
    return n_pad, rows, lanes, tile_rows


def _sse_pallas(output, target):
    """Pallas streaming sum((target - output)^2) over all elements."""
    n = output.size
    itemsize = jnp.dtype(output.dtype).itemsize
    n_pad, rows, lanes, tile_rows = _choose_layout(n, itemsize)

    out_flat = output.reshape(-1)
    tgt_flat = target.reshape(-1)
    if n_pad != n:
        pad = n_pad - n
        out_flat = jnp.pad(out_flat, (0, pad))
        tgt_flat = jnp.pad(tgt_flat, (0, pad))
    out2d = out_flat.reshape(rows, lanes)       # contiguous reshape: free
    tgt2d = tgt_flat.reshape(rows, lanes)

    n_tiles = (rows + tile_rows - 1) // tile_rows
    n_chunks = max(1, min(_num_tensorcores(), n_tiles))   # 1 on v5e/v6e
    tiles_per_chunk = (n_tiles + n_chunks - 1) // n_chunks
    last_tile = n_tiles - 1

    def tile_map(c, t):
        # Clamp so no DMA block starts past the array; the clamped duplicate
        # tiles (only possible when n_chunks > 1) are masked in-kernel.
        return (jnp.minimum(c * tiles_per_chunk + t, last_tile), 0)

    fold_rows = (tile_rows % 8 == 0)
    acc_rows = 8 if fold_rows else tile_rows

    kernel = functools.partial(_sse_kernel, rows=rows, tile_rows=tile_rows,
                               fold_rows=fold_rows)

    # Explicit VMEM budget: 2 inputs x 2 pipeline buffers x block + accumulator
    # + output blocks, with 2x slack.  Fits v5e's 16 MiB scoped default and
    # v7x's 64 MiB/TC physical VMEM.
    block_bytes = tile_rows * lanes * itemsize
    acc_bytes = acc_rows * lanes * 4
    plan_bytes = 2 * 2 * block_bytes + acc_bytes + 2 * n_chunks * 8 * 128 * 4
    vmem_limit = int(min(32 << 20, max(2 * plan_bytes, 8 << 20)))

    cost = pl.CostEstimate(
        flops=3 * rows * lanes,
        transcendentals=0,
        bytes_accessed=2 * rows * lanes * itemsize + n_chunks * 8 * 128 * 4,
    )

    psums = pl.pallas_call(
        kernel,
        out_shape=jax.ShapeDtypeStruct((n_chunks, 8, 128), jnp.float32),
        grid_spec=pltpu.PrefetchScalarGridSpec(
            num_scalar_prefetch=0,
            grid=(n_chunks, tiles_per_chunk),
            in_specs=[
                pl.BlockSpec((tile_rows, lanes), tile_map),   # output tile
                pl.BlockSpec((tile_rows, lanes), tile_map),   # target tile
            ],
            out_specs=pl.BlockSpec((1, 8, 128), lambda c, t: (c, 0, 0)),
            scratch_shapes=[pltpu.VMEM((acc_rows, lanes), jnp.float32)],
        ),
        compiler_params=pltpu.CompilerParams(
            dimension_semantics=("parallel", "arbitrary"),
            vmem_limit_bytes=vmem_limit),
        cost_estimate=cost,
    )(out2d, tgt2d)

    return jnp.sum(psums[:, 0, 0])


def _loss_to_distrib(loss, *, output_dim, maximum):
    """exp(Binomial(n=output_dim-1, probs=p).log_prob(arange(output_dim)))."""
    clip_loss = jnp.clip(loss, -maximum, maximum)
    p = (clip_loss + maximum) / (2.0 * maximum)
    n = float(output_dim - 1)
    kf = jnp.arange(output_dim, dtype=jnp.float32)
    logc = jnp.array(
        [math.lgamma(n + 1.0) - math.lgamma(k + 1.0) - math.lgamma(n - k + 1.0)
         for k in range(output_dim)], dtype=jnp.float32)
    # xlogy-style guards so p == 0 / p == 1 match torch (no 0 * -inf NaN).
    t1 = jnp.where(kf == 0.0, 0.0, kf * jnp.log(p))
    t2 = jnp.where(kf == n, 0.0, (n - kf) * jnp.log1p(-p))
    return jnp.exp(logc + t1 + t2)


def mse_loss_forward(output, target, scale, *, output_dim=20, maximum=20.0,
                     min_pallas_elems=_MIN_PALLAS_ELEMS):
    """Pallas implementation of MSELoss.forward.

    output, target: (batch, seq, dim)  -- native dtype streamed (no host upcast)
    scale:          (1,) float32 parameter
    returns:        (output_dim,) float32 distribution
    """
    B, S, D = output.shape
    n_elems = B * S * D

    if n_elems < min_pallas_elems:
        # Tiny inputs: launch/pipeline overhead dominates; XLA's fused reduce
        # is strictly faster here.
        d = target.astype(jnp.float32) - output.astype(jnp.float32)
        sse = jnp.sum(d * d)
    else:
        sse = _sse_pallas(output, target)

    loss = scale[0] * sse / jnp.float32(n_elems)
    return _loss_to_distrib(loss, output_dim=output_dim, maximum=maximum)


def _reference(output, target, scale, *, output_dim=20, maximum=20.0):
    """Pure-JAX reference mirroring the PyTorch forward."""
    loss = scale[0] * jnp.mean((target.astype(jnp.float32)
                                - output.astype(jnp.float32)) ** 2)
    clip_loss = jnp.clip(loss, -maximum, maximum)
    p = (clip_loss + maximum) / (2.0 * maximum)
    n = output_dim - 1
    k = jnp.arange(output_dim, dtype=jnp.float32)
    logc = (jax.scipy.special.gammaln(n + 1.0)
            - jax.scipy.special.gammaln(k + 1.0)
            - jax.scipy.special.gammaln(n - k + 1.0))
    return jnp.exp(logc + k * jnp.log(p) + (n - k) * jnp.log1p(-p))


if __name__ == "__main__":
    root = jax.random.PRNGKey(0)
    # nn.Parameter(torch.Tensor([1])) -> deterministic init of 1.0
    scale = jnp.array([1.0], dtype=jnp.float32)

    def make_inputs(key, B, S, D, V, dtype=jnp.float32):
        k1, k2, k3, k4 = jax.random.split(key, 4)
        out = jax.random.normal(k1, (B, S, D), dtype=jnp.float32).astype(dtype)
        tgt = jax.random.normal(k2, (B, S, D), dtype=jnp.float32).astype(dtype)
        ou = jax.random.normal(k3, (V, D), dtype=jnp.float32)   # unused by forward
        tu = jax.random.normal(k4, (V, D), dtype=jnp.float32)   # unused by forward
        return out, tgt, ou, tu

    keys = jax.random.split(root, 3)

    # 1) Small module-sized shapes (batch=2, seq=8, dim=32), forced through the
    #    Pallas kernel so the kernel path is exercised even at tiny size.
    out_s, tgt_s, _, _ = make_inputs(keys[0], 2, 8, 32, 16)
    fwd_small = jax.jit(functools.partial(mse_loss_forward, output_dim=20,
                                          maximum=20.0, min_pallas_elems=0))
    dist_s = jax.block_until_ready(fwd_small(out_s, tgt_s, scale))
    ref_s = _reference(out_s, tgt_s, scale, output_dim=20, maximum=20.0)
    assert dist_s.shape == (20,)
    assert jnp.allclose(dist_s, ref_s, rtol=5e-5, atol=1e-6), (dist_s, ref_s)

    # 2) Multi-tile streaming case with a ragged last tile (masked slow path),
    #    default bypass threshold -> takes the Pallas path.
    out_m, tgt_m, _, _ = make_inputs(keys[1], 7, 100, 1024, 16)
    fwd = jax.jit(functools.partial(mse_loss_forward, output_dim=20, maximum=20.0))
    dist_m = jax.block_until_ready(fwd(out_m, tgt_m, scale))
    ref_m = _reference(out_m, tgt_m, scale, output_dim=20, maximum=20.0)
    assert jnp.allclose(dist_m, ref_m, rtol=5e-5, atol=1e-6), (dist_m, ref_m)

    # 3) bf16 inputs: exercises itemsize-aware tiling + in-kernel f32 upcast.
    out_b, tgt_b, _, _ = make_inputs(keys[2], 4, 256, 512, 16, dtype=jnp.bfloat16)
    dist_b = jax.block_until_ready(fwd(out_b, tgt_b, scale))
    ref_b = _reference(out_b, tgt_b, scale, output_dim=20, maximum=20.0)
    assert jnp.allclose(dist_b, ref_b, rtol=5e-5, atol=1e-6), (dist_b, ref_b)

    # 4) Tiny-input bypass path (pure-JAX reduce) still matches the reference.
    dist_t = jax.block_until_ready(fwd(out_s, tgt_s, scale))
    assert jnp.allclose(dist_t, ref_s, rtol=5e-5, atol=1e-6), (dist_t, ref_s)

    print("KERNEL_OK")
</pallas_src>

<mosaic_0001>
module attributes {stable_mosaic.version = 11 : i64} {
  func.func @_sse_kernel(%arg0: i32, %arg1: i32, %arg2: memref<1x512xf32, #tpu.memory_space<vmem>>, %arg3: memref<1x512xf32, #tpu.memory_space<vmem>>, %arg4: memref<1x8x128xf32, #tpu.memory_space<vmem>>, %arg5: memref<1x512xf32, #tpu.memory_space<vmem>>) attributes {dimension_semantics = [#tpu.dimension_semantics<parallel>, #tpu.dimension_semantics<arbitrary>], iteration_bounds = array<i64: 1, 1>, scalar_prefetch = 0 : i64, scratch_operands = 1 : i64, tpu.core_type = #tpu.core_type<tc>, window_params = [{transform_indices = @transform_0, window_bounds = array<i64: 1, 512>}, {transform_indices = @transform_1, window_bounds = array<i64: 1, 512>}, {transform_indices = @transform_2, window_bounds = array<i64: 1, 8, 128>}]} {
    %c0_i32 = arith.constant 0 : i32
    %0 = arith.cmpi eq, %arg1, %c0_i32 : i32
    %1 = arith.extui %0 : i1 to i32
    %c0_i32_0 = arith.constant 0 : i32
    %2 = arith.cmpi ne, %1, %c0_i32_0 : i32
    scf.if %2 {
      %cst = arith.constant 0.000000e+00 : f32
      %16 = vector.broadcast %cst : f32 to vector<1x512xf32>
      %c0 = arith.constant 0 : index
      %c0_8 = arith.constant 0 : index
      %17 = vector.load %arg5[%c0, %c0_8] : memref<1x512xf32, #tpu.memory_space<vmem>>, vector<1x512xf32>
      tpu.vector_store %arg5[%c0, %c0_8], %16 {strides = array<i32>} : memref<1x512xf32, #tpu.memory_space<vmem>>, vector<1x512xf32>,
    } else {
    }
    %c1_i32 = arith.constant 1 : i32
    %3 = arith.muli %arg0, %c1_i32 : i32
    %4 = arith.addi %3, %arg1 : i32
    %c1_i32_1 = arith.constant 1 : i32
    %5 = arith.addi %4, %c1_i32_1 : i32
    %c1_i32_2 = arith.constant 1 : i32
    %6 = arith.muli %5, %c1_i32_2 : i32
    %c1_i32_3 = arith.constant 1 : i32
    %7 = arith.cmpi sgt, %6, %c1_i32_3 : i32
    %true = arith.constant true
    %8 = arith.xori %7, %true : i1
    %9 = arith.extui %8 : i1 to i32
    %c0_i32_4 = arith.constant 0 : i32
    %10 = arith.cmpi ne, %9, %c0_i32_4 : i32
    scf.if %10 {
      %c0 = arith.constant 0 : index
      %c0_8 = arith.constant 0 : index
      %16 = vector.load %arg3[%c0, %c0_8] : memref<1x512xf32, #tpu.memory_space<vmem>>, vector<1x512xf32>
      %c0_9 = arith.constant 0 : index
      %c0_10 = arith.constant 0 : index
      %17 = vector.load %arg2[%c0_9, %c0_10] : memref<1x512xf32, #tpu.memory_space<vmem>>, vector<1x512xf32>
      %18 = arith.subf %16, %17 : vector<1x512xf32>
      %19 = arith.mulf %18, %18 : vector<1x512xf32>
      %c0_11 = arith.constant 0 : index
      %c0_12 = arith.constant 0 : index
      %20 = vector.load %arg5[%c0_11, %c0_12] : memref<1x512xf32, #tpu.memory_space<vmem>>, vector<1x512xf32>
      %21 = arith.addf %20, %19 : vector<1x512xf32>
      %c0_13 = arith.constant 0 : index
      %c0_14 = arith.constant 0 : index
      %22 = vector.load %arg5[%c0_13, %c0_14] : memref<1x512xf32, #tpu.memory_space<vmem>>, vector<1x512xf32>
      tpu.vector_store %arg5[%c0_13, %c0_14], %21 {strides = array<i32>} : memref<1x512xf32, #tpu.memory_space<vmem>>, vector<1x512xf32>,
    } else {
    }
    %11 = arith.extui %7 : i1 to i32
    %c0_i32_5 = arith.constant 0 : i32
    %12 = arith.cmpi ne, %11, %c0_i32_5 : i32
    scf.if %12 {
      %c1_i32_8 = arith.constant 1 : i32
      %16 = arith.muli %4, %c1_i32_8 : i32
      %17 = tpu.iota {dimensions = array<i32: 0>} : vector<1x512xi32>
      %18 = vector.broadcast %16 : i32 to vector<1x512xi32>
      %19 = arith.addi %18, %17 : vector<1x512xi32>
      %c1_i32_9 = arith.constant 1 : i32
      %20 = vector.broadcast %c1_i32_9 : i32 to vector<1x512xi32>
      %21 = arith.cmpi slt, %19, %20 : vector<1x512xi32>
      %c0 = arith.constant 0 : index
      %c0_10 = arith.constant 0 : index
      %22 = vector.load %arg3[%c0, %c0_10] : memref<1x512xf32, #tpu.memory_space<vmem>>, vector<1x512xf32>
      %c0_11 = arith.constant 0 : index
      %c0_12 = arith.constant 0 : index
      %23 = vector.load %arg2[%c0_11, %c0_12] : memref<1x512xf32, #tpu.memory_space<vmem>>, vector<1x512xf32>
      %24 = arith.subf %22, %23 : vector<1x512xf32>
      %cst = arith.constant 0.000000e+00 : f32
      %25 = vector.broadcast %cst : f32 to vector<1x512xf32>
      %26 = arith.select %21, %24, %25 : vector<1x512xi1>, vector<1x512xf32>
      %27 = arith.mulf %26, %26 : vector<1x512xf32>
      %c0_13 = arith.constant 0 : index
      %c0_14 = arith.constant 0 : index
      %28 = vector.load %arg5[%c0_13, %c0_14] : memref<1x512xf32, #tpu.memory_space<vmem>>, vector<1x512xf32>
      %29 = arith.addf %28, %27 : vector<1x512xf32>
      %c0_15 = arith.constant 0 : index
      %c0_16 = arith.constant 0 : index
      %30 = vector.load %arg5[%c0_15, %c0_16] : memref<1x512xf32, #tpu.memory_space<vmem>>, vector<1x512xf32>
      tpu.vector_store %arg5[%c0_15, %c0_16], %29 {strides = array<i32>} : memref<1x512xf32, #tpu.memory_space<vmem>>, vector<1x512xf32>,
    } else {
    }
    %c0_i32_6 = arith.constant 0 : i32
    %13 = arith.cmpi eq, %arg1, %c0_i32_6 : i32
    %14 = arith.extui %13 : i1 to i32
    %c0_i32_7 = arith.constant 0 : i32
    %15 = arith.cmpi ne, %14, %c0_i32_7 : i32
    scf.if %15 {
      %cst = arith.constant 0.000000e+00 : f32
      %16 = vector.broadcast %cst : f32 to vector<1x8x128xf32>
      %c0 = arith.constant 0 : index
      %c0_8 = arith.constant 0 : index
      %17 = vector.load %arg5[%c0, %c0_8] : memref<1x512xf32, #tpu.memory_space<vmem>>, vector<1x512xf32>
      %18 = vector.shape_cast %17 : vector<1x512xf32> to vector<1x1x512xf32>
      %cst_9 = arith.constant dense<0.000000e+00> : vector<1xf32>
      %19 = vector.multi_reduction <add>, %18, %cst_9 [1, 2] : vector<1x1x512xf32> to vector<1xf32>
      %20 = vector.shape_cast %19 : vector<1xf32> to vector<1x1x1xf32>
      %21 = vector.extract %20[0, 0, 0] : f32 from vector<1x1x1xf32>
      %22 = vector.broadcast %21 : f32 to vector<1x8x128xf32>
      %23 = arith.addf %16, %22 : vector<1x8x128xf32>
      %c0_10 = arith.constant 0 : index
      %c0_11 = arith.constant 0 : index
      %c0_12 = arith.constant 0 : index
      %24 = vector.load %arg4[%c0_10, %c0_11, %c0_12] : memref<1x8x128xf32, #tpu.memory_space<vmem>>, vector<1x8x128xf32>
      tpu.vector_store %arg4[%c0_10, %c0_11, %c0_12], %23 {strides = array<i32>} : memref<1x8x128xf32, #tpu.memory_space<vmem>>, vector<1x8x128xf32>,
    } else {
    }
    return
  }
  func.func @transform_0(%arg0: i32, %arg1: i32) -> (i32, i32) {
    %c1_i32 = arith.constant 1 : i32
    %0 = arith.muli %arg0, %c1_i32 : i32
    %1 = arith.addi %0, %arg1 : i32
    %c0_i32 = arith.constant 0 : i32
    %2 = arith.minsi %1, %c0_i32 : i32
    %c0_i32_0 = arith.constant 0 : i32
    %c0_i32_1 = arith.constant 0 : i32
    return %2, %c0_i32_0 : i32, i32
  }
  func.func @transform_1(%arg0: i32, %arg1: i32) -> (i32, i32) {
    %c1_i32 = arith.constant 1 : i32
    %0 = arith.muli %arg0, %c1_i32 : i32
    %1 = arith.addi %0, %arg1 : i32
    %c0_i32 = arith.constant 0 : i32
    %2 = arith.minsi %1, %c0_i32 : i32
    %c0_i32_0 = arith.constant 0 : i32
    %c0_i32_1 = arith.constant 0 : i32
    return %2, %c0_i32_0 : i32, i32
  }
  func.func @transform_2(%arg0: i32, %arg1: i32) -> (i32, i32, i32) {
    %c0_i32 = arith.constant 0 : i32
    %c0_i32_0 = arith.constant 0 : i32
    %c0_i32_1 = arith.constant 0 : i32
    return %arg0, %c0_i32, %c0_i32_0 : i32, i32, i32
  }
}

</mosaic_0001>

<llo_original>
// kernel: mse_loss_forward.1
$region0: #{mse_loss_forward.1}
  #allocation0 [shape = 'u32[]', space=smem, size = 0x4, offset = 0x4, fixed_abs, tag = 'smem constant byte address 0x4 - core index']
  #allocation1 [shape = 'u32[144,128]{1,0:T(1,128)}', space=vmem, size = 0x12000, scoped, tag = 'internal scratch']
  #allocation2 [shape = 'f32[1,512]{1,0:T(1,128)}', space=vmem, size = 0x800, scoped, tag = 'scratch operand']
  %s0 = inlined_call_operand.vmem [shape: f32[1,512], index: 0, kind: input, shape index: {}]
  %s1 = inlined_call_operand.vmem [shape: f32[1,512], index: 1, kind: input, shape index: {}]
  %s2 = inlined_call_operand.vmem [shape: f32[1,8,128], index: 2, kind: output, shape index: {}]
  %s3 = sld [smem:[#allocation0]]
  $region34: #{mse_loss_forward.1} parent=0
    _
  %s5 = ssub.s32 1, %s3
  %s6 = scalar_select 0, %s5, %s3
  // Predicated region
  $region2: #{mse_loss_forward.1} parent=0 // pred_check
    _
  $region3: #{mse_loss_forward.1} parent=0 // pred_check_branch
    %8 = sbr.rel (0) target = $region5
  $region4: #{mse_loss_forward.1} parent=0 // pred_region
    %s9 = sadd.s32 0, 0
    %p10 = scmp.lt.s32.totalorder %s9, 0
    %s11 = scalar_select %p10, %s9, 0
    %p12 = scmp.lt.s32.totalorder %s11, 0
    %s13 = scalar_select %p12, %s11, 0
    %s14 = smul.addr %s13, 4
    %s15 = scalar_lea.vmem %s0, %s14
    %s16 = sadd.s32 0, 0
    %p17 = scmp.lt.s32.totalorder %s16, 0
    %s18 = scalar_select %p17, %s16, 0
  $region5: #{mse_loss_forward.1} parent=0 // pred_fallthru
    _
  // Predicated region
  $region6: #{mse_loss_forward.1} parent=0 // pred_check
    _
  $region7: #{mse_loss_forward.1} parent=0 // pred_check_branch
    %20 = sbr.rel (0) target = $region9
  $region8: #{mse_loss_forward.1} parent=0 // pred_region
    %s21 = sadd.s32 0, 0
    %p22 = scmp.lt.s32.totalorder %s21, 0
    %s23 = scalar_select %p22, %s21, 0
    %p24 = scmp.lt.s32.totalorder %s23, 0
    %s25 = scalar_select %p24, %s23, 0
    %s26 = smul.addr %s25, 4
    %s27 = scalar_lea.vmem %s1, %s26
    %s28 = sadd.s32 0, 0
    %p29 = scmp.lt.s32.totalorder %s28, 0
    %s30 = scalar_select %p29, %s28, 0
  $region9: #{mse_loss_forward.1} parent=0 // pred_fallthru
    _
  %s31 = sadd.s32 0, 0
  %p32 = scmp.lt.s32.totalorder %s31, 0
  %s33 = scalar_select %p32, %s31, 0
  %p34 = scmp.lt.s32.totalorder %s33, 0
  %s35 = scalar_select %p34, %s33, 0
  %s36 = smul.addr %s35, 4
  %s37 = scalar_lea.vmem %s0, %s36
  %s38 = sadd.s32 0, 0
  %p39 = scmp.lt.s32.totalorder %s38, 0
  %s40 = scalar_select %p39, %s38, 0
  %p41 = scmp.lt.s32.totalorder %s40, 0
  %s42 = scalar_select %p41, %s40, 0
  %s43 = smul.addr %s42, 4
  %s44 = scalar_lea.vmem %s1, %s43
  %s45 = sadd.s32 0, 0
  %p46 = scmp.lt.s32.totalorder %s45, 0
  %s47 = scalar_select %p46, %s45, 0
  %p48 = scmp.lt.s32.totalorder %s47, 0
  %s49 = scalar_select %p48, %s47, 0
  %s50 = smul.addr %s49, 4
  %s51 = scalar_lea.vmem %s0, %s50
  %s52 = sadd.s32 0, 0
  %p53 = scmp.lt.s32.totalorder %s52, 0
  %s54 = scalar_select %p53, %s52, 0
  %s55 = sadd.s32 0, 0
  %p56 = scmp.lt.s32.totalorder %s55, 0
  %s57 = scalar_select %p56, %s55, 0
  %p58 = scmp.lt.s32.totalorder %s57, 0
  %s59 = scalar_select %p58, %s57, 0
  %s60 = smul.addr %s59, 4
  %s61 = scalar_lea.vmem %s1, %s60
  %s62 = sadd.s32 0, 0
  %p63 = scmp.lt.s32.totalorder %s62, 0
  %s64 = scalar_select %p63, %s62, 0
  %p65 = scmp.eq.s32.totalorder 0, 0
  // Predicated region
  $region10: #{mse_loss_forward.1} parent=0 // pred_check
    %p66 = pneg %p65
  $region11: #{mse_loss_forward.1} parent=0 // pred_check_branch
    %68 = sbr.rel (%p66) target = $region13
  $region12: #{mse_loss_forward.1} parent=0 // pred_region
    %v69 = vlaneseq
    %vm70 = vcmp.ge.s32.totalorder %v69, 0
    %vm71 = vcmp.lt.s32.totalorder %v69, 512
    %vm72 = vmand %vm70, %vm71
    %73 = vst.msk [vmem:[#allocation2] sm:$0xf] %vm72, 0.0
  $region13: #{mse_loss_forward.1} parent=0 // pred_fallthru
    _
  %s74 = sadd.s32 0, 0
  %s75 = sadd.s32 %s74, 1
  %p76 = scmp.gt.s32.totalorder %s75, 1
  %p77 = scmp.le.s32.totalorder %s75, 1
  // Predicated region
  $region14: #{mse_loss_forward.1} parent=0 // pred_check
    %p78 = pneg %p77
  $region15: #{mse_loss_forward.1} parent=0 // pred_check_branch
    %80 = sbr.rel (%p78) target = $region17
  $region16: #{mse_loss_forward.1} parent=0 // pred_region
    %v81 = vld [vmem:[%s61] sm:$0xf]
    %v82 = vld [vmem:[%s51] sm:$0xf]
    %v83 = vsub.f32 %v81, %v82
    %v84 = vmul.f32 %v83, %v83
    %v85 = vld [vmem:[#allocation2] sm:$0xf]
    %v86 = vadd.f32 %v85, %v84
    %v87 = vlaneseq
    %vm88 = vcmp.ge.s32.totalorder %v87, 0
    %vm89 = vcmp.lt.s32.totalorder %v87, 512
    %vm90 = vmand %vm88, %vm89
    %91 = vst.msk [vmem:[#allocation2] sm:$0xf] %vm90, %v86
  $region17: #{mse_loss_forward.1} parent=0 // pred_fallthru
    _
  // Predicated region
  $region18: #{mse_loss_forward.1} parent=0 // pred_check
    %p92 = pneg %p76
  $region19: #{mse_loss_forward.1} parent=0 // pred_check_branch
    %94 = sbr.rel (%p92) target = $region21
  $region20: #{mse_loss_forward.1} parent=0 // pred_region
    %v95 = vlaneseq
    %v96 = vshrl.u32 %v95, 7
    %v97 = vstv %s74
    %v98 = vadd.s32 %v97, %v96
    %vm99 = vcmp.lt.s32.totalorder %v98, 1
    %v100 = vld [vmem:[%s61] sm:$0xf]
    %v101 = vld [vmem:[%s51] sm:$0xf]
    %v102 = vsub.f32 %v100, %v101
    %v104 = vlaneseq
    %v105 = vshrl.u32 %v104, 7
    %v106 = vsub.s32 0, %v105
    %v107 = vrot.slane %v102, %v106
    %v108 = vlaneseq
    %v109 = vshrl.u32 %v108, 7
    %v110 = vsub.s32 1, %v109
    %v111 = vrot.slane %v102, %v110
    %v112 = vlaneseq
    %v113 = vshrl.u32 %v112, 7
    %v114 = vsub.s32 2, %v113
    %v115 = vrot.slane %v102, %v114
    %v116 = vlaneseq
    %v117 = vshrl.u32 %v116, 7
    %v118 = vsub.s32 3, %v117
    %v119 = vrot.slane %v102, %v118
    %v124 = vsel %vm99, %v107, 0.0
    %v125 = vsel %vm99, %v111, 0.0
    %v126 = vsel %vm99, %v115, 0.0
    %v127 = vsel %vm99, %v119, 0.0
    %v128 = vmul.f32 %v124, %v124
    %v129 = vmul.f32 %v125, %v125
    %v130 = vmul.f32 %v126, %v126
    %v131 = vmul.f32 %v127, %v127
    %v132 = vld [vmem:[#allocation2] sm:$0xf]
    %v137 = vcombine.low %v128, %v129
    %v138 = vcombine.low %v130, %v131
    %v140 = vunpack.c.l.s4 1966171168
    %v141 = vunpack.c.0.s8 %v140
    %v142 = vlaneseq
    %v143 = vshrl.u32 %v142, 7
    %v144 = vsub.s32 %v141, %v143
    %v145 = vrot.slane %v137, %v144
    %v147 = vunpack.c.l.s4 1966171168
    %v148 = vunpack.c.0.s8 %v147
    %v149 = vlaneseq
    %v150 = vshrl.u32 %v149, 7
    %v151 = vsub.s32 %v148, %v150
    %v152 = vrot.slane %v138, %v151
    %v153 = vcombine.low %v145, %v152
    %v155 = vunpack.c.l.s4 1966171168
    %v156 = vunpack.c.0.s8 %v155
    %v157 = vlaneseq
    %v158 = vshrl.u32 %v157, 7
    %v159 = vsub.s32 %v156, %v158
    %v160 = vrot.slane %v153, %v159
    %v162 = vadd.f32 %v132, %v160
    %v163 = vlaneseq
    %vm164 = vcmp.ge.s32.totalorder %v163, 0
    %vm165 = vcmp.lt.s32.totalorder %v163, 512
    %vm166 = vmand %vm164, %vm165
    %167 = vst.msk [vmem:[#allocation2] sm:$0xf] %vm166, %v162
  $region21: #{mse_loss_forward.1} parent=0 // pred_fallthru
    _
  // Predicated region
  $region22: #{mse_loss_forward.1} parent=0 // pred_check
    %p168 = pneg %p65
  $region23: #{mse_loss_forward.1} parent=0 // pred_check_branch
    %170 = sbr.rel (%p168) target = $region25
  $region24: #{mse_loss_forward.1} parent=0 // pred_region
    %v171 = vld [vmem:[#allocation2] sm:$0xf]
    %v173 = vlaneseq
    %v174 = vshrl.u32 %v173, 7
    %v175 = vsub.s32 0, %v174
    %v176 = vrot.slane %v171, %v175
    %v177 = vlaneseq
    %v178 = vshrl.u32 %v177, 7
    %v179 = vsub.s32 1, %v178
    %v180 = vrot.slane %v171, %v179
    %v181 = vlaneseq
    %v182 = vshrl.u32 %v181, 7
    %v183 = vsub.s32 2, %v182
    %v184 = vrot.slane %v171, %v183
    %v185 = vlaneseq
    %v186 = vshrl.u32 %v185, 7
    %v187 = vsub.s32 3, %v186
    %v188 = vrot.slane %v171, %v187
    %vm193 = vcmask 1040384
    %v194 = vsel %vm193, %v176, 0.0
    %v195 = vsel %vm193, %v180, 0.0
    %v196 = vadd.f32 %v194, %v195
    %v197 = vsel %vm193, %v184, 0.0
    %v198 = vadd.f32 %v196, %v197
    %v199 = vsel %vm193, %v188, 0.0
    %v200 = vadd.f32 %v198, %v199
    %201 = vadd.xlane.f32.xlu0 %v200
    %v202 = vpop.xlane.xlu0 %201
    %v203 = vrot.slane %v202, 4
    %v204 = vadd.f32 %v202, %v203
    %v205 = vrot.slane %v204, 2
    %v206 = vadd.f32 %v204, %v205
    %v207 = vrot.slane %v206, 1
    %v208 = vadd.f32 %v206, %v207
    %s209 = vtos %v208
    %v210 = vstv %s209
    %v211 = vadd.f32 %v210, 0.0
    %212 = vst [vmem:[%s2] sm:$0xff] %v211
  $region25: #{mse_loss_forward.1} parent=0 // pred_fallthru
    _
  // Predicated region
  $region26: #{mse_loss_forward.1} parent=0 // pred_check
    _
  $region27: #{mse_loss_forward.1} parent=0 // pred_check_branch
    %214 = sbr.rel (0) target = $region29
  $region28: #{mse_loss_forward.1} parent=0 // pred_region
    _
  $region29: #{mse_loss_forward.1} parent=0 // pred_fallthru
    _
  // Predicated region
  $region30: #{mse_loss_forward.1} parent=0 // pred_check
    _
  $region31: #{mse_loss_forward.1} parent=0 // pred_check_branch
    %216 = sbr.rel (0) target = $region33
  $region32: #{mse_loss_forward.1} parent=0 // pred_region
    _
  $region33: #{mse_loss_forward.1} parent=0 // pred_fallthru
    _

</llo_original>
